<compile_context>
chip_gen: v6e
topology: v6e:2x2x1
jax: 0.10.0
libtpu: 0.0.40
codegen_flags: <defaults>
</compile_context>

<pallas_src>
import math

import jax
import jax.numpy as jnp
from jax.experimental import pallas as pl
from jax.experimental.pallas import tpu as pltpu


def _round_up(x, m):
    return ((x + m - 1) // m) * m


def _cdiv(a, b):
    return -(-a // b)


def _tpu_budget():
    """Return (physical VMEM bytes, TensorCores per chip) with safe defaults.

    Defaults assume the tightest current part (v7x: 64 MiB VMEM) and a single
    TensorCore, so an unknown / unqueryable platform still gets a config that
    fits everywhere.
    """
    vmem = 64 * 1024 * 1024
    cores = 1
    try:
        info = pltpu.get_tpu_info()
        for name in ("vmem_capacity_bytes", "vmem_size_bytes", "vmem_bytes"):
            v = getattr(info, name, None)
            if v:
                vmem = int(v)
                break
        for name in ("num_cores", "tensorcore_count", "num_tensorcores"):
            v = getattr(info, name, None)
            if v:
                cores = int(v)
                break
    except Exception:
        pass
    return vmem, cores


def _ssl_kernel(x_ref, w1_ref, b1_ref, w2_ref, b2_ref, o_ref, acc_ref):
    k = pl.program_id(1)

    @pl.when(k == 0)
    def _():
        acc_ref[...] = jnp.zeros_like(acc_ref)

    # Partial first matmul for this K tile.  x is streamed as f32 and cast to
    # bf16 in-register (VPU, hidden under MXU slack); accumulation is f32.
    acc_ref[...] += jnp.dot(x_ref[...].astype(jnp.bfloat16), w1_ref[...],
                            preferred_element_type=jnp.float32)

    @pl.when(k == pl.num_programs(1) - 1)
    def _():
        # Bias + ReLU, feed the second MXU pass in bf16.
        h = jnp.maximum(acc_ref[...] + b1_ref[...], 0.0).astype(jnp.bfloat16)
        z = jnp.dot(h, w2_ref[...], preferred_element_type=jnp.float32) + b2_ref[...]
        # F.normalize(dim=-1): z / max(||z||, 1e-12) == z * rsqrt(max(||z||^2, 1e-24))
        sq = jnp.sum(z * z, axis=-1, keepdims=True)
        o_ref[...] = (z * jax.lax.rsqrt(jnp.maximum(sq, 1e-24))).astype(o_ref.dtype)


def self_supervised_forward(x, w1, b1, w2, b2, *, tm_target=1024, tk_target=1024):
    """x: (B, N, C, H, W) f32 -> (B, N, d_out) f32, rows L2-normalized."""
    B, N = x.shape[:2]
    d_in = math.prod(x.shape[2:])
    rows = B * N
    d_hid = w1.shape[1]
    d_out = w2.shape[1]

    # Glue: reshape is metadata-only (contiguous); NO wrapper-side cast of x.
    x2d = x.reshape(rows, d_in)
    w1b = w1.astype(jnp.bfloat16)
    w2b = w2.astype(jnp.bfloat16)
    b1f = b1.reshape(1, d_hid).astype(jnp.float32)
    b2f = b2.reshape(1, d_out).astype(jnp.float32)

    vmem_bytes, n_cores = _tpu_budget()
    budget = int(vmem_bytes * 0.70)          # headroom for compiler-internal scratch
    x_isize = jnp.dtype(x2d.dtype).itemsize

    # ---- tile derivation -------------------------------------------------
    rows16 = _round_up(rows, 16)             # bf16 MXU feed packs 16 sublanes/vreg
    d_in128 = _round_up(d_in, 128)
    tm = tm_target if rows16 >= tm_target else rows16
    tk = tk_target if d_in128 >= tk_target else d_in128

    def footprint(tm_, tk_):
        return (2 * tm_ * tk_ * x_isize      # x tiles (double-buffered)
                + 2 * tk_ * d_hid * 2        # w1 K-tiles (bf16, double-buffered)
                + d_hid * d_out * 2          # w2 (bf16, single-buffered, resident)
                + (d_hid + d_out) * 4        # biases (single-buffered)
                + 2 * tm_ * d_out * 4        # out tiles (f32, double-buffered)
                + tm_ * d_hid * 4            # f32 accumulator scratch
                + tm_ * d_hid * 2)           # bf16 hidden staged in the epilogue

    # Shrink tk first (does not change HBM traffic), then tm (tm is the real
    # lever: w1 HBM traffic scales with rows_p/tm, so keep it as big as fits).
    while footprint(tm, tk) > budget and tk > 256:
        tk = max(256, _round_up(tk // 2, 128))
    while footprint(tm, tk) > budget and tm > 64:
        tm = max(64, _round_up(tm // 2, 16))

    # Multi-TensorCore parts (v7x): give the "parallel" row axis >= n_cores
    # tiles so one core doesn't sit idle on a single oversized row tile.
    if n_cores > 1 and rows16 >= n_cores * 16:
        while _cdiv(rows16, tm) < n_cores and tm > 16:
            tm = max(16, _round_up(max(tm // 2, 16), 16))

    rows_p = _round_up(rows, tm)
    d_in_p = _round_up(d_in, tk)

    # ---- pad only ragged tails (explicit zeros; never rely on OOB reads) --
    if rows_p != rows or d_in_p != d_in:
        x2d = jnp.pad(x2d, ((0, rows_p - rows), (0, d_in_p - d_in)))
    if d_in_p != d_in:
        w1b = jnp.pad(w1b, ((0, d_in_p - d_in), (0, 0)))

    grid = (rows_p // tm, d_in_p // tk)
    n_row_tiles = grid[0]

    cost = pl.CostEstimate(
        flops=2 * rows_p * (d_in_p * d_hid + d_hid * d_out),
        transcendentals=rows_p,                                # one rsqrt per row
        bytes_accessed=(rows_p * d_in_p * x_isize              # x streamed once
                        + n_row_tiles * d_in_p * d_hid * 2     # w1 re-read / row tile
                        + d_hid * d_out * 2 + (d_hid + d_out) * 4
                        + rows_p * d_out * 4),
    )

    resident = pl.Buffered(1)   # constant index_map => single VMEM buffer suffices

    out2d = pl.pallas_call(
        _ssl_kernel,
        out_shape=jax.ShapeDtypeStruct((rows_p, d_out), jnp.float32),
        grid_spec=pltpu.PrefetchScalarGridSpec(
            num_scalar_prefetch=0,
            grid=grid,
            in_specs=[
                pl.BlockSpec((tm, tk), lambda i, k: (i, k)),        # x tile (f32)
                pl.BlockSpec((tk, d_hid), lambda i, k: (k, 0)),     # w1 K-tile (bf16)
                pl.BlockSpec((1, d_hid), lambda i, k: (0, 0),       # b1 (resident)
                             pipeline_mode=resident),
                pl.BlockSpec((d_hid, d_out), lambda i, k: (0, 0),   # w2 (resident)
                             pipeline_mode=resident),
                pl.BlockSpec((1, d_out), lambda i, k: (0, 0),       # b2 (resident)
                             pipeline_mode=resident),
            ],
            out_specs=pl.BlockSpec((tm, d_out), lambda i, k: (i, 0)),
            scratch_shapes=[
                pltpu.VMEM((tm, d_hid), jnp.float32),   # first-matmul accumulator
            ],
        ),
        compiler_params=pltpu.CompilerParams(
            # Row tiles are independent -> "parallel" (megacore-sharded where
            # available).  K is the reduction -> last axis, "arbitrary".
            dimension_semantics=("parallel", "arbitrary"),
            # Raise the scoped VMEM limit above the 16/32 MiB defaults; tile
            # derivation above already keeps the footprint under ~70% physical.
            vmem_limit_bytes=int(vmem_bytes * 0.85),
        ),
        cost_estimate=cost,
    )(x2d, w1b, b1f, w2b, b2f)

    # Glue: drop row padding, restore (B, N, d_out).
    return out2d[:rows].reshape(B, N, d_out)


def _reference_f32(x, w1, b1, w2, b2):
    """Pure-JAX full-f32 reference (PyTorch semantics)."""
    B, N = x.shape[:2]
    x2d = x.reshape(B * N, -1)
    h = jnp.maximum(x2d @ w1 + b1, 0.0)
    z = (h @ w2 + b2).reshape(B, N, -1)
    norm = jnp.sqrt(jnp.sum(z * z, axis=-1, keepdims=True))
    return z / jnp.maximum(norm, 1e-12)


def _reference_bf16(x, w1, b1, w2, b2):
    """Pure-JAX reference mirroring the kernel's bf16-operand / f32-accum path."""
    B, N = x.shape[:2]
    x2d = x.reshape(B * N, -1).astype(jnp.bfloat16)
    h = jnp.dot(x2d, w1.astype(jnp.bfloat16), preferred_element_type=jnp.float32) + b1
    h = jnp.maximum(h, 0.0).astype(jnp.bfloat16)
    z = jnp.dot(h, w2.astype(jnp.bfloat16), preferred_element_type=jnp.float32) + b2
    z = z.reshape(B, N, -1)
    sq = jnp.sum(z * z, axis=-1, keepdims=True)
    return z * jax.lax.rsqrt(jnp.maximum(sq, 1e-24))


if __name__ == "__main__":
    # Small shapes consistent with the forward: x is (batch, views, C, H, W).
    B, N, C, H, W = 2, 4, 4, 8, 8            # -> rows = 8, d_in = 256
    D_IN = C * H * W                         # 256
    D_HID = 256
    D_OUT = 128

    key = jax.random.PRNGKey(0)
    kx, k1, k2, k3, k4 = jax.random.split(key, 5)

    x = jax.random.normal(kx, (B, N, C, H, W), dtype=jnp.float32)
    w1 = jax.random.normal(k1, (D_IN, D_HID), dtype=jnp.float32) * 0.05
    b1 = jax.random.normal(k2, (1, D_HID), dtype=jnp.float32) * 0.01
    w2 = jax.random.normal(k3, (D_HID, D_OUT), dtype=jnp.float32) * 0.05
    b2 = jax.random.normal(k4, (1, D_OUT), dtype=jnp.float32) * 0.01

    out = self_supervised_forward(x, w1, b1, w2, b2)
    out = jax.block_until_ready(out)
    assert out.shape == (B, N, D_OUT), out.shape

    # Tight check vs a reference following the same bf16-matmul / f32-accum path.
    ref_bf = _reference_bf16(x, w1, b1, w2, b2)
    assert jnp.allclose(out, ref_bf, atol=2e-3, rtol=2e-3), "mismatch vs bf16 reference"

    # Loose check vs the full-f32 PyTorch-equivalent reference (bf16 operand rounding).
    ref_f32 = _reference_f32(x, w1, b1, w2, b2)
    assert jnp.allclose(out, ref_f32, atol=3e-2, rtol=3e-2), "mismatch vs f32 reference"

    # Sanity: rows are unit-norm.
    assert jnp.allclose(jnp.linalg.norm(out, axis=-1), 1.0, atol=1e-4)

    print("KERNEL_OK")
</pallas_src>

<mosaic_0001>
module attributes {stable_mosaic.version = 11 : i64} {
  func.func @_ssl_kernel(%arg0: i32, %arg1: i32, %arg2: memref<16x256xf32, #tpu.memory_space<vmem>>, %arg3: memref<256x256xbf16, #tpu.memory_space<vmem>>, %arg4: memref<1x256xf32, #tpu.memory_space<vmem>>, %arg5: memref<256x128xbf16, #tpu.memory_space<vmem>>, %arg6: memref<1x128xf32, #tpu.memory_space<vmem>>, %arg7: memref<16x128xf32, #tpu.memory_space<vmem>>, %arg8: memref<16x256xf32, #tpu.memory_space<vmem>>) attributes {dimension_semantics = [#tpu.dimension_semantics<parallel>, #tpu.dimension_semantics<arbitrary>], iteration_bounds = array<i64: 1, 1>, scalar_prefetch = 0 : i64, scratch_operands = 1 : i64, tpu.core_type = #tpu.core_type<tc>, window_params = [{transform_indices = @transform_0, window_bounds = array<i64: 16, 256>}, {transform_indices = @transform_1, window_bounds = array<i64: 256, 256>}, {pipeline_mode = #tpu.pipeline_mode<synchronous>, transform_indices = @transform_2, window_bounds = array<i64: 1, 256>}, {pipeline_mode = #tpu.pipeline_mode<synchronous>, transform_indices = @transform_3, window_bounds = array<i64: 256, 128>}, {pipeline_mode = #tpu.pipeline_mode<synchronous>, transform_indices = @transform_4, window_bounds = array<i64: 1, 128>}, {transform_indices = @transform_5, window_bounds = array<i64: 16, 128>}]} {
    %c0_i32 = arith.constant 0 : i32
    %0 = arith.cmpi eq, %arg1, %c0_i32 : i32
    %1 = arith.extui %0 : i1 to i32
    %c0_i32_0 = arith.constant 0 : i32
    %2 = arith.cmpi ne, %1, %c0_i32_0 : i32
    scf.if %2 {
      %cst_10 = arith.constant 0.000000e+00 : f32
      %13 = vector.broadcast %cst_10 : f32 to vector<16x256xf32>
      %c0_11 = arith.constant 0 : index
      %c0_12 = arith.constant 0 : index
      %14 = vector.load %arg8[%c0_11, %c0_12] : memref<16x256xf32, #tpu.memory_space<vmem>>, vector<16x256xf32>
      tpu.vector_store %arg8[%c0_11, %c0_12], %13 {strides = array<i32>} : memref<16x256xf32, #tpu.memory_space<vmem>>, vector<16x256xf32>,
    } else {
    }
    %c0 = arith.constant 0 : index
    %c0_1 = arith.constant 0 : index
    %3 = vector.load %arg8[%c0, %c0_1] : memref<16x256xf32, #tpu.memory_space<vmem>>, vector<16x256xf32>
    %c0_2 = arith.constant 0 : index
    %c0_3 = arith.constant 0 : index
    %4 = vector.load %arg2[%c0_2, %c0_3] : memref<16x256xf32, #tpu.memory_space<vmem>>, vector<16x256xf32>
    %5 = arith.truncf %4 : vector<16x256xf32> to vector<16x256xbf16>
    %c0_4 = arith.constant 0 : index
    %c0_5 = arith.constant 0 : index
    %6 = vector.load %arg3[%c0_4, %c0_5] : memref<256x256xbf16, #tpu.memory_space<vmem>>, vector<256x256xbf16>
    %cst = arith.constant dense<0.000000e+00> : vector<16x256xf32>
    %7 = tpu.matmul %5, %6, %cst {dimension_numbers = #tpu.dot_dimension_numbers<[1], [0], [0], [1], [0, 0, 1, 1], [], []>} : vector<16x256xbf16>, vector<256x256xbf16>, vector<16x256xf32> -> vector<16x256xf32>
    %8 = arith.addf %3, %7 : vector<16x256xf32>
    %c0_6 = arith.constant 0 : index
    %c0_7 = arith.constant 0 : index
    %9 = vector.load %arg8[%c0_6, %c0_7] : memref<16x256xf32, #tpu.memory_space<vmem>>, vector<16x256xf32>
    tpu.vector_store %arg8[%c0_6, %c0_7], %8 {strides = array<i32>} : memref<16x256xf32, #tpu.memory_space<vmem>>, vector<16x256xf32>,
    %c0_i32_8 = arith.constant 0 : i32
    %10 = arith.cmpi eq, %arg1, %c0_i32_8 : i32
    %11 = arith.extui %10 : i1 to i32
    %c0_i32_9 = arith.constant 0 : i32
    %12 = arith.cmpi ne, %11, %c0_i32_9 : i32
    scf.if %12 {
      %c0_10 = arith.constant 0 : index
      %c0_11 = arith.constant 0 : index
      %13 = vector.load %arg8[%c0_10, %c0_11] : memref<16x256xf32, #tpu.memory_space<vmem>>, vector<16x256xf32>
      %c0_12 = arith.constant 0 : index
      %c0_13 = arith.constant 0 : index
      %14 = vector.load %arg4[%c0_12, %c0_13] : memref<1x256xf32, #tpu.memory_space<vmem>>, vector<1x256xf32>
      %15 = vector.broadcast %14 : vector<1x256xf32> to vector<16x256xf32>
      %16 = arith.addf %13, %15 : vector<16x256xf32>
      %cst_14 = arith.constant 0.000000e+00 : f32
      %17 = vector.broadcast %cst_14 : f32 to vector<16x256xf32>
      %18 = arith.maximumf %16, %17 : vector<16x256xf32>
      %19 = arith.truncf %18 : vector<16x256xf32> to vector<16x256xbf16>
      %c0_15 = arith.constant 0 : index
      %c0_16 = arith.constant 0 : index
      %20 = vector.load %arg5[%c0_15, %c0_16] : memref<256x128xbf16, #tpu.memory_space<vmem>>, vector<256x128xbf16>
      %cst_17 = arith.constant dense<0.000000e+00> : vector<16x128xf32>
      %21 = tpu.matmul %19, %20, %cst_17 {dimension_numbers = #tpu.dot_dimension_numbers<[1], [0], [0], [1], [0, 0, 1, 1], [], []>} : vector<16x256xbf16>, vector<256x128xbf16>, vector<16x128xf32> -> vector<16x128xf32>
      %c0_18 = arith.constant 0 : index
      %c0_19 = arith.constant 0 : index
      %22 = vector.load %arg6[%c0_18, %c0_19] : memref<1x128xf32, #tpu.memory_space<vmem>>, vector<1x128xf32>
      %23 = vector.broadcast %22 : vector<1x128xf32> to vector<16x128xf32>
      %24 = arith.addf %21, %23 : vector<16x128xf32>
      %25 = arith.mulf %24, %24 : vector<16x128xf32>
      %cst_20 = arith.constant dense<0.000000e+00> : vector<16xf32>
      %26 = vector.multi_reduction <add>, %25, %cst_20 [1] : vector<16x128xf32> to vector<16xf32>
      %27 = vector.shape_cast %26 : vector<16xf32> to vector<16x1xf32>
      %cst_21 = arith.constant 1.000000e-24 : f32
      %28 = vector.broadcast %cst_21 : f32 to vector<16x1xf32>
      %29 = arith.maximumf %27, %28 : vector<16x1xf32>
      %30 = math.rsqrt %29 : vector<16x1xf32>
      %31 = vector.broadcast %30 : vector<16x1xf32> to vector<16x128xf32>
      %32 = arith.mulf %24, %31 : vector<16x128xf32>
      %c0_22 = arith.constant 0 : index
      %c0_23 = arith.constant 0 : index
      %33 = vector.load %arg7[%c0_22, %c0_23] : memref<16x128xf32, #tpu.memory_space<vmem>>, vector<16x128xf32>
      tpu.vector_store %arg7[%c0_22, %c0_23], %32 {strides = array<i32>} : memref<16x128xf32, #tpu.memory_space<vmem>>, vector<16x128xf32>,
    } else {
    }
    return
  }
  func.func @transform_0(%arg0: i32, %arg1: i32) -> (i32, i32) {
    %c0_i32 = arith.constant 0 : i32
    return %arg0, %arg1 : i32, i32
  }
  func.func @transform_1(%arg0: i32, %arg1: i32) -> (i32, i32) {
    %c0_i32 = arith.constant 0 : i32
    %c0_i32_0 = arith.constant 0 : i32
    return %arg1, %c0_i32 : i32, i32
  }
  func.func @transform_2(%arg0: i32, %arg1: i32) -> (i32, i32) {
    %c0_i32 = arith.constant 0 : i32
    %c0_i32_0 = arith.constant 0 : i32
    %c0_i32_1 = arith.constant 0 : i32
    return %c0_i32, %c0_i32_0 : i32, i32
  }
  func.func @transform_3(%arg0: i32, %arg1: i32) -> (i32, i32) {
    %c0_i32 = arith.constant 0 : i32
    %c0_i32_0 = arith.constant 0 : i32
    %c0_i32_1 = arith.constant 0 : i32
    return %c0_i32, %c0_i32_0 : i32, i32
  }
  func.func @transform_4(%arg0: i32, %arg1: i32) -> (i32, i32) {
    %c0_i32 = arith.constant 0 : i32
    %c0_i32_0 = arith.constant 0 : i32
    %c0_i32_1 = arith.constant 0 : i32
    return %c0_i32, %c0_i32_0 : i32, i32
  }
  func.func @transform_5(%arg0: i32, %arg1: i32) -> (i32, i32) {
    %c0_i32 = arith.constant 0 : i32
    %c0_i32_0 = arith.constant 0 : i32
    return %arg0, %c0_i32 : i32, i32
  }
}

</mosaic_0001>

<llo_original>
// kernel: tpu_custom_call.1
$region0: #{tpu_custom_call.1}
  #allocation0 [shape = 'u32[]', space=smem, size = 0x4, offset = 0x4, fixed_abs, tag = 'smem constant byte address 0x4 - core index']
  #allocation1 [shape = 'u32[144,128]{1,0:T(1,128)}', space=vmem, size = 0x12000, scoped, tag = 'internal scratch']
  #allocation2 [shape = 'f32[16,256]{1,0:T(8,128)}', space=vmem, size = 0x4000, scoped, tag = 'scratch operand']
  %s0 = inlined_call_operand.hbm [shape: f32[16,256], index: 0, kind: input, shape index: {}]
  %s1 = inlined_call_operand.hbm [shape: bf16[256,256], index: 1, kind: input, shape index: {}]
  %s2 = inlined_call_operand.vmem [shape: f32[1,256], index: 2, kind: input, shape index: {}]
  %s3 = inlined_call_operand.hbm [shape: bf16[256,128], index: 3, kind: input, shape index: {}]
  %s4 = inlined_call_operand.vmem [shape: f32[1,128], index: 4, kind: input, shape index: {}]
  %s5 = inlined_call_operand.hbm [shape: f32[16,128], index: 5, kind: output, shape index: {}]
  %s6 = sld [smem:[#allocation0]]
  $region50: #{tpu_custom_call.1} parent=0
    _
  %s8 = ssub.s32 1, %s6
  %s9 = scalar_select 0, %s8, %s6
  $region1: #{tpu_custom_call.1} parent=0
    #allocation3 [shape = 'u8[16384]{0}', space=vmem, size = 0x4000, scoped, tag = 'input window, operand 0, single buffered']
    #allocation4 [shape = 's32[1]{0}', space=sflag, size = 0x4, scoped, tag = 'scoped memory for tpu_custom_call.1']
    #allocation5 [shape = 's32[1]{0}', space=sflag, size = 0x4, scoped, tag = 'scoped memory for tpu_custom_call.1']
    #allocation6 [shape = 'u8[131072]{0}', space=vmem, size = 0x20000, scoped, tag = 'input window, operand 1, single buffered']
    #allocation7 [shape = 's32[1]{0}', space=sflag, size = 0x4, scoped, tag = 'scoped memory for tpu_custom_call.1']
    #allocation8 [shape = 'u8[65536]{0}', space=vmem, size = 0x10000, scoped, tag = 'input window, operand 3, single buffered']
    #allocation9 [shape = 'u8[8192]{0}', space=vmem, size = 0x2000, scoped, tag = 'output window, operand 0, single buffered']
    %10 = vsyncpa [#allocation4], 0
    %11 = vsyncpa [#allocation7], 0
    %12 = vsyncpa [#allocation5], 0
    // Predicated region
    $region2: #{tpu_custom_call.1} parent=1 // pred_check
      _
    $region3: #{tpu_custom_call.1} parent=1 // pred_check_branch
      %14 = sbr.rel (0) target = $region5
    $region4: #{tpu_custom_call.1} parent=1 // pred_region
      %s16 = ssub.s32 512, 512
      %17 = vsyncadd [#allocation4], %s16
      %s18 = sshll.u32 [#allocation3], 4
      %s19 = int_to_ptr.vmem [resolvable:$true] %s18
      %24 = dma.hbm_to_vmem [thread:$0]  %s0, 512, %s19, [#allocation4], 256, 256, 16
    $region5: #{tpu_custom_call.1} parent=1 // pred_fallthru
      _
    // Predicated region
    $region6: #{tpu_custom_call.1} parent=1 // pred_check
      _
    $region7: #{tpu_custom_call.1} parent=1 // pred_check_branch
      %26 = sbr.rel (0) target = $region9
    $region8: #{tpu_custom_call.1} parent=1 // pred_region
      %s28 = ssub.s32 4096, 4096
      %29 = vsyncadd [#allocation7], %s28
      %s30 = sshll.u32 [#allocation6], 4
      %s31 = int_to_ptr.vmem [resolvable:$true] %s30
      %36 = dma.hbm_to_vmem [thread:$0]  %s1, 4096, %s31, [#allocation7], 128, 128, 8
    $region9: #{tpu_custom_call.1} parent=1 // pred_fallthru
      _
    // Predicated region
    $region10: #{tpu_custom_call.1} parent=1 // pred_check
      _
    $region11: #{tpu_custom_call.1} parent=1 // pred_check_branch
      %38 = sbr.rel (0) target = $region13
    $region12: #{tpu_custom_call.1} parent=1 // pred_region
      _
    $region13: #{tpu_custom_call.1} parent=1 // pred_fallthru
      _
    // Predicated region
    $region14: #{tpu_custom_call.1} parent=1 // pred_check
      _
    $region15: #{tpu_custom_call.1} parent=1 // pred_check_branch
      %40 = sbr.rel (0) target = $region17
    $region16: #{tpu_custom_call.1} parent=1 // pred_region
      %s42 = ssub.s32 2048, 2048
      %43 = vsyncadd [#allocation7], %s42
      %s44 = sshll.u32 [#allocation8], 4
      %s45 = int_to_ptr.vmem [resolvable:$true] %s44
      %50 = dma.hbm_to_vmem [thread:$0]  %s3, 2048, %s45, [#allocation7], 64, 64, 4
    $region17: #{tpu_custom_call.1} parent=1 // pred_fallthru
      _
    // Predicated region
    $region18: #{tpu_custom_call.1} parent=1 // pred_check
      _
    $region19: #{tpu_custom_call.1} parent=1 // pred_check_branch
      %52 = sbr.rel (0) target = $region21
    $region20: #{tpu_custom_call.1} parent=1 // pred_region
      _
    $region21: #{tpu_custom_call.1} parent=1 // pred_fallthru
      _
    // Predicated region
    $region22: #{tpu_custom_call.1} parent=1 // pred_check
      _
    $region23: #{tpu_custom_call.1} parent=1 // pred_check_branch
      %54 = sbr.rel (0) target = $region25
    $region24: #{tpu_custom_call.1} parent=1 // pred_region
      %55 = dma.done [#allocation4], 512
    $region25: #{tpu_custom_call.1} parent=1 // pred_fallthru
      _
    // Predicated region
    $region26: #{tpu_custom_call.1} parent=1 // pred_check
      _
    $region27: #{tpu_custom_call.1} parent=1 // pred_check_branch
      %57 = sbr.rel (0) target = $region29
    $region28: #{tpu_custom_call.1} parent=1 // pred_region
      %58 = dma.done [#allocation7], 4096
    $region29: #{tpu_custom_call.1} parent=1 // pred_fallthru
      _
    // Predicated region
    $region30: #{tpu_custom_call.1} parent=1 // pred_check
      _
    $region31: #{tpu_custom_call.1} parent=1 // pred_check_branch
      %60 = sbr.rel (0) target = $region33
    $region32: #{tpu_custom_call.1} parent=1 // pred_region
      %61 = dma.done [#allocation7], 2048
    $region33: #{tpu_custom_call.1} parent=1 // pred_fallthru
      _
    %p63 = scmp.eq.s32.totalorder 0, 0
    // Predicated region
    $region34: #{tpu_custom_call.1} parent=1 // pred_check
      %p64 = pneg %p63
    $region35: #{tpu_custom_call.1} parent=1 // pred_check_branch
      %66 = sbr.rel (%p64) target = $region37
    $region36: #{tpu_custom_call.1} parent=1 // pred_region
      %67 = vst [vmem:[#allocation2] sm:$0xff] 0.0
      %68 = vst [vmem:[#allocation2 + $0x8] sm:$0xff] 0.0
      %69 = vst [vmem:[#allocation2 + $0x10] sm:$0xff] 0.0
      %70 = vst [vmem:[#allocation2 + $0x18] sm:$0xff] 0.0
    $region37: #{tpu_custom_call.1} parent=1 // pred_fallthru
      _
    %v71 = vld [vmem:[#allocation2] sm:$0xff]
    %v72 = vld [vmem:[#allocation2 + $0x8] sm:$0xff]
    %v73 = vld [vmem:[#allocation2 + $0x10] sm:$0xff]
    %v74 = vld [vmem:[#allocation2 + $0x18] sm:$0xff]
    %v75 = vld [vmem:[#allocation3] sm:$0xff]
    %v76 = vld [vmem:[#allocation3 + $0x8] sm:$0xff]
    %v77 = vld [vmem:[#allocation3 + $0x10] sm:$0xff]
    %v78 = vld [vmem:[#allocation3 + $0x18] sm:$0xff]
    %v79 = vpack.c.bf16 %v77, %v75
    %v80 = vpack.c.bf16 %v78, %v76
    %v81 = vld [vmem:[#allocation6] sm:$0xff]
    %v82 = vld [vmem:[#allocation6 + $0x8] sm:$0xff]
    %v83 = vld [vmem:[#allocation6 + $0x10] sm:$0xff]
    %v84 = vld [vmem:[#allocation6 + $0x18] sm:$0xff]
    %v85 = vld [vmem:[#allocation6 + $0x20] sm:$0xff]
    %v86 = vld [vmem:[#allocation6 + $0x28] sm:$0xff]
    %v87 = vld [vmem:[#allocation6 + $0x30] sm:$0xff]
    %v88 = vld [vmem:[#allocation6 + $0x38] sm:$0xff]
    %v89 = vld [vmem:[#allocation6 + $0x40] sm:$0xff]
    %v90 = vld [vmem:[#allocation6 + $0x48] sm:$0xff]
    %v91 = vld [vmem:[#allocation6 + $0x50] sm:$0xff]
    %v92 = vld [vmem:[#allocation6 + $0x58] sm:$0xff]
    %v93 = vld [vmem:[#allocation6 + $0x60] sm:$0xff]
    %v94 = vld [vmem:[#allocation6 + $0x68] sm:$0xff]
    %v95 = vld [vmem:[#allocation6 + $0x70] sm:$0xff]
    %v96 = vld [vmem:[#allocation6 + $0x78] sm:$0xff]
    %v97 = vld [vmem:[#allocation6 + $0x80] sm:$0xff]
    %v98 = vld [vmem:[#allocation6 + $0x88] sm:$0xff]
    %v99 = vld [vmem:[#allocation6 + $0x90] sm:$0xff]
    %v100 = vld [vmem:[#allocation6 + $0x98] sm:$0xff]
    %v101 = vld [vmem:[#allocation6 + $0xa0] sm:$0xff]
    %v102 = vld [vmem:[#allocation6 + $0xa8] sm:$0xff]
    %v103 = vld [vmem:[#allocation6 + $0xb0] sm:$0xff]
    %v104 = vld [vmem:[#allocation6 + $0xb8] sm:$0xff]
    %v105 = vld [vmem:[#allocation6 + $0xc0] sm:$0xff]
    %v106 = vld [vmem:[#allocation6 + $0xc8] sm:$0xff]
    %v107 = vld [vmem:[#allocation6 + $0xd0] sm:$0xff]
    %v108 = vld [vmem:[#allocation6 + $0xd8] sm:$0xff]
    %v109 = vld [vmem:[#allocation6 + $0xe0] sm:$0xff]
    %v110 = vld [vmem:[#allocation6 + $0xe8] sm:$0xff]
    %v111 = vld [vmem:[#allocation6 + $0xf0] sm:$0xff]
    %v112 = vld [vmem:[#allocation6 + $0xf8] sm:$0xff]
    %v145 = vunpack.c.l.b16 %v81
    %v146 = vunpack.c.h.b16 %v81
    %v147 = vunpack.c.l.b16 %v82
    %v148 = vunpack.c.h.b16 %v82
    %v149 = vunpack.c.l.b16 %v83
    %v150 = vunpack.c.h.b16 %v83
    %v151 = vunpack.c.l.b16 %v84
    %v152 = vunpack.c.h.b16 %v84
    %v153 = vunpack.c.l.b16 %v85
    %v154 = vunpack.c.h.b16 %v85
    %v155 = vunpack.c.l.b16 %v86
    %v156 = vunpack.c.h.b16 %v86
    %v157 = vunpack.c.l.b16 %v87
    %v158 = vunpack.c.h.b16 %v87
    %v159 = vunpack.c.l.b16 %v88
    %v160 = vunpack.c.h.b16 %v88
    %v161 = vunpack.c.l.b16 %v89
    %v162 = vunpack.c.h.b16 %v89
    %v163 = vunpack.c.l.b16 %v90
    %v164 = vunpack.c.h.b16 %v90
    %v165 = vunpack.c.l.b16 %v91
    %v166 = vunpack.c.h.b16 %v91
    %v167 = vunpack.c.l.b16 %v92
    %v168 = vunpack.c.h.b16 %v92
    %v169 = vunpack.c.l.b16 %v93
    %v170 = vunpack.c.h.b16 %v93
    %v171 = vunpack.c.l.b16 %v94
    %v172 = vunpack.c.h.b16 %v94
    %v173 = vunpack.c.l.b16 %v95
    %v174 = vunpack.c.h.b16 %v95
    %v175 = vunpack.c.l.b16 %v96
    %v176 = vunpack.c.h.b16 %v96
    %v177 = vunpack.c.l.b16 %v97
    %v178 = vunpack.c.h.b16 %v97
    %v179 = vunpack.c.l.b16 %v98
    %v180 = vunpack.c.h.b16 %v98
    %v181 = vunpack.c.l.b16 %v99
    %v182 = vunpack.c.h.b16 %v99
    %v183 = vunpack.c.l.b16 %v100
    %v184 = vunpack.c.h.b16 %v100
    %v185 = vunpack.c.l.b16 %v101
    %v186 = vunpack.c.h.b16 %v101
    %v187 = vunpack.c.l.b16 %v102
    %v188 = vunpack.c.h.b16 %v102
    %v189 = vunpack.c.l.b16 %v103
    %v190 = vunpack.c.h.b16 %v103
    %v191 = vunpack.c.l.b16 %v104
    %v192 = vunpack.c.h.b16 %v104
    %v193 = vunpack.c.l.b16 %v105
    %v194 = vunpack.c.h.b16 %v105
    %v195 = vunpack.c.l.b16 %v106
    %v196 = vunpack.c.h.b16 %v106
    %v197 = vunpack.c.l.b16 %v107
    %v198 = vunpack.c.h.b16 %v107
    %v199 = vunpack.c.l.b16 %v108
    %v200 = vunpack.c.h.b16 %v108
    %v201 = vunpack.c.l.b16 %v109
    %v202 = vunpack.c.h.b16 %v109
    %v203 = vunpack.c.l.b16 %v110
    %v204 = vunpack.c.h.b16 %v110
    %v205 = vunpack.c.l.b16 %v111
    %v206 = vunpack.c.h.b16 %v111
    %v207 = vunpack.c.l.b16 %v112
    %v208 = vunpack.c.h.b16 %v112
    %v209 = vpack.c.b16 %v147, %v145
    %v210 = vpack.c.b16 %v148, %v146
    %v211 = vpack.c.b16 %v151, %v149
    %v212 = vpack.c.b16 %v152, %v150
    %v213 = vpack.c.b16 %v155, %v153
    %v214 = vpack.c.b16 %v156, %v154
    %v215 = vpack.c.b16 %v159, %v157
    %v216 = vpack.c.b16 %v160, %v158
    %v217 = vpack.c.b16 %v163, %v161
    %v218 = vpack.c.b16 %v164, %v162
    %v219 = vpack.c.b16 %v167, %v165
    %v220 = vpack.c.b16 %v168, %v166
    %v221 = vpack.c.b16 %v171, %v169
    %v222 = vpack.c.b16 %v172, %v170
    %v223 = vpack.c.b16 %v175, %v173
    %v224 = vpack.c.b16 %v176, %v174
    %v225 = vpack.c.b16 %v179, %v177
    %v226 = vpack.c.b16 %v180, %v178
    %v227 = vpack.c.b16 %v183, %v181
    %v228 = vpack.c.b16 %v184, %v182
    %v229 = vpack.c.b16 %v187, %v185
    %v230 = vpack.c.b16 %v188, %v186
    %v231 = vpack.c.b16 %v191, %v189
    %v232 = vpack.c.b16 %v192, %v190
    %v233 = vpack.c.b16 %v195, %v193
    %v234 = vpack.c.b16 %v196, %v194
    %v235 = vpack.c.b16 %v199, %v197
    %v236 = vpack.c.b16 %v200, %v198
    %v237 = vpack.c.b16 %v203, %v201
    %v238 = vpack.c.b16 %v204, %v202
    %v239 = vpack.c.b16 %v207, %v205
    %v240 = vpack.c.b16 %v208, %v206
    %273 = vmatprep.subr.bf16.mxu0 %v224
    %274 = vmatpush1.bf16.msra.mxu0 %v223
    %275 = vmatprep.subr.bf16.mxu0 %v222
    %276 = vmatpush1.bf16.msra.mxu0 %v221
    %277 = vmatprep.subr.bf16.mxu0 %v220
    %278 = vmatpush1.bf16.msra.mxu0 %v219
    %279 = vmatprep.subr.bf16.mxu0 %v218
    %280 = vmatpush1.bf16.msra.mxu0 %v217
    %281 = vmatprep.subr.bf16.mxu0 %v216
    %282 = vmatpush1.bf16.msra.mxu0 %v215
    %283 = vmatprep.subr.bf16.mxu0 %v214
    %284 = vmatpush1.bf16.msra.mxu0 %v213
    %285 = vmatprep.subr.bf16.mxu0 %v212
    %286 = vmatpush1.bf16.msra.mxu0 %v211
    %287 = vmatprep.subr.bf16.mxu0 %v210
    %288 = vmatpush1.bf16.msra.mxu0 %v209
    %289 = vmatprep.subr.bf16.mxu0 %v240
    %290 = vmatpush2.bf16.msra.mxu0 %v239
    %291 = vmatprep.subr.bf16.mxu0 %v238
    %292 = vmatpush2.bf16.msra.mxu0 %v237
    %293 = vmatprep.subr.bf16.mxu0 %v236
    %294 = vmatpush2.bf16.msra.mxu0 %v235
    %295 = vmatprep.subr.bf16.mxu0 %v234
    %296 = vmatpush2.bf16.msra.mxu0 %v233
    %297 = vmatprep.subr.bf16.mxu0 %v232
    %298 = vmatpush2.bf16.msra.mxu0 %v231
    %299 = vmatprep.subr.bf16.mxu0 %v230
    %300 = vmatpush2.bf16.msra.mxu0 %v229
    %301 = vmatprep.subr.bf16.mxu0 %v228
    %302 = vmatpush2.bf16.msra.mxu0 %v227
    %303 = vmatprep.subr.bf16.mxu0 %v226
    %304 = vmatpush2.bf16.msra.mxu0 %v225
    %305 = vmatprep.mubr.bf16.mxu0 %v80
    %306 = vmatmul.mubr.bf16.gmra.mxu0 %v79
    %v307 = vpop.f32.mrf.mxu0
    %v308 = vadd.f32 0.0, %v307
    %v309 = vpop.f32.mrf.mxu0
    %v310 = vadd.f32 0.0, %v309
    %v311 = vpop.f32.mrf.mxu0
    %v312 = vadd.f32 0.0, %v311
    %v313 = vpop.f32.mrf.mxu0
    %v314 = vadd.f32 0.0, %v313
    %315 = vdwg.mxu0
    %v316 = vadd.f32 %v71, %v308
    %v317 = vadd.f32 %v72, %v310
    %v318 = vadd.f32 %v73, %v312
    %v319 = vadd.f32 %v74, %v314
    %320 = vst [vmem:[#allocation2] sm:$0xff] %v316
    %321 = vst [vmem:[#allocation2 + $0x8] sm:$0xff] %v317
    %322 = vst [vmem:[#allocation2 + $0x10] sm:$0xff] %v318
    %323 = vst [vmem:[#allocation2 + $0x18] sm:$0xff] %v319
    // Predicated region
    $region38: #{tpu_custom_call.1} parent=1 // pred_check
      %p324 = pneg %p63
    $region39: #{tpu_custom_call.1} parent=1 // pred_check_branch
      %326 = sbr.rel (%p324) target = $region41
    $region40: #{tpu_custom_call.1} parent=1 // pred_region
      %v327 = vld [vmem:[#allocation2] sm:$0xff]
      %v328 = vld [vmem:[#allocation2 + $0x8] sm:$0xff]
      %v329 = vld [vmem:[#allocation2 + $0x10] sm:$0xff]
      %v330 = vld [vmem:[#allocation2 + $0x18] sm:$0xff]
      %v331 = vld [vmem:[%s2] sm:$0x3]
      %v333 = vlaneseq
      %v334 = vshrl.u32 %v333, 7
      %v335 = vsub.s32 0, %v334
      %v336 = vrot.slane %v331, %v335
      %v337 = vlaneseq
      %v338 = vshrl.u32 %v337, 7
      %v339 = vsub.s32 1, %v338
      %v340 = vrot.slane %v331, %v339
      %v343 = vadd.f32 %v327, %v336
      %v344 = vadd.f32 %v328, %v340
      %v345 = vadd.f32 %v329, %v336
      %v346 = vadd.f32 %v330, %v340
      %v347 = vmax.f32 %v343, 0.0
      %v348 = vmax.f32 %v344, 0.0
      %v349 = vmax.f32 %v345, 0.0
      %v350 = vmax.f32 %v346, 0.0
      %v351 = vpack.c.bf16 %v349, %v347
      %v352 = vpack.c.bf16 %v350, %v348
      %v353 = vld [vmem:[#allocation8] sm:$0xf]
      %v354 = vld [vmem:[#allocation8 + $0x4] sm:$0xf]
      %v355 = vld [vmem:[#allocation8 + $0x8] sm:$0xf]
      %v356 = vld [vmem:[#allocation8 + $0xc] sm:$0xf]
      %v357 = vld [vmem:[#allocation8 + $0x10] sm:$0xf]
      %v358 = vld [vmem:[#allocation8 + $0x14] sm:$0xf]
      %v359 = vld [vmem:[#allocation8 + $0x18] sm:$0xf]
      %v360 = vld [vmem:[#allocation8 + $0x1c] sm:$0xf]
      %v361 = vld [vmem:[#allocation8 + $0x20] sm:$0xf]
      %v362 = vld [vmem:[#allocation8 + $0x24] sm:$0xf]
      %v363 = vld [vmem:[#allocation8 + $0x28] sm:$0xf]
      %v364 = vld [vmem:[#allocation8 + $0x2c] sm:$0xf]
      %v365 = vld [vmem:[#allocation8 + $0x30] sm:$0xf]
      %v366 = vld [vmem:[#allocation8 + $0x34] sm:$0xf]
      %v367 = vld [vmem:[#allocation8 + $0x38] sm:$0xf]
      %v368 = vld [vmem:[#allocation8 + $0x3c] sm:$0xf]
      %v369 = vld [vmem:[#allocation8 + $0x40] sm:$0xf]
      %v370 = vld [vmem:[#allocation8 + $0x44] sm:$0xf]
      %v371 = vld [vmem:[#allocation8 + $0x48] sm:$0xf]
      %v372 = vld [vmem:[#allocation8 + $0x4c] sm:$0xf]
      %v373 = vld [vmem:[#allocation8 + $0x50] sm:$0xf]
      %v374 = vld [vmem:[#allocation8 + $0x54] sm:$0xf]
      %v375 = vld [vmem:[#allocation8 + $0x58] sm:$0xf]
      %v376 = vld [vmem:[#allocation8 + $0x5c] sm:$0xf]
      %v377 = vld [vmem:[#allocation8 + $0x60] sm:$0xf]
      %v378 = vld [vmem:[#allocation8 + $0x64] sm:$0xf]
      %v379 = vld [vmem:[#allocation8 + $0x68] sm:$0xf]
      %v380 = vld [vmem:[#allocation8 + $0x6c] sm:$0xf]
      %v381 = vld [vmem:[#allocation8 + $0x70] sm:$0xf]
      %v382 = vld [vmem:[#allocation8 + $0x74] sm:$0xf]
      %v383 = vld [vmem:[#allocation8 + $0x78] sm:$0xf]
      %v384 = vld [vmem:[#allocation8 + $0x7c] sm:$0xf]
      %v385 = vld [vmem:[%s4] sm:$0x1]
      %v387 = vlaneseq
      %v388 = vshrl.u32 %v387, 7
      %v389 = vsub.s32 0, %v388
      %v390 = vrot.slane %v385, %v389
      %v424 = vunpack.c.l.b16 %v353
      %v425 = vunpack.c.l.b16 %v354
      %v426 = vunpack.c.l.b16 %v355
      %v427 = vunpack.c.l.b16 %v356
      %v428 = vunpack.c.l.b16 %v357
      %v429 = vunpack.c.l.b16 %v358
      %v430 = vunpack.c.l.b16 %v359
      %v431 = vunpack.c.l.b16 %v360
      %v432 = vunpack.c.l.b16 %v361
      %v433 = vunpack.c.l.b16 %v362
      %v434 = vunpack.c.l.b16 %v363
      %v435 = vunpack.c.l.b16 %v364
      %v436 = vunpack.c.l.b16 %v365
      %v437 = vunpack.c.l.b16 %v366
      %v438 = vunpack.c.l.b16 %v367
      %v439 = vunpack.c.l.b16 %v368
      %v440 = vunpack.c.l.b16 %v369
      %v441 = vunpack.c.l.b16 %v370
      %v442 = vunpack.c.l.b16 %v371
      %v443 = vunpack.c.l.b16 %v372
      %v444 = vunpack.c.l.b16 %v373
      %v445 = vunpack.c.l.b16 %v374
      %v446 = vunpack.c.l.b16 %v375
      %v447 = vunpack.c.l.b16 %v376
      %v448 = vunpack.c.l.b16 %v377
      %v449 = vunpack.c.l.b16 %v378
      %v450 = vunpack.c.l.b16 %v379
      %v451 = vunpack.c.l.b16 %v380
      %v452 = vunpack.c.l.b16 %v381
      %v453 = vunpack.c.l.b16 %v382
      %v454 = vunpack.c.l.b16 %v383
      %v455 = vunpack.c.l.b16 %v384
      %v456 = vpack.c.b16 %v425, %v424
      %v457 = vpack.c.b16 %v427, %v426
      %v458 = vpack.c.b16 %v429, %v428
      %v459 = vpack.c.b16 %v431, %v430
      %v460 = vpack.c.b16 %v433, %v432
      %v461 = vpack.c.b16 %v435, %v434
      %v462 = vpack.c.b16 %v437, %v436
      %v463 = vpack.c.b16 %v439, %v438
      %v464 = vpack.c.b16 %v441, %v440
      %v465 = vpack.c.b16 %v443, %v442
      %v466 = vpack.c.b16 %v445, %v444
      %v467 = vpack.c.b16 %v447, %v446
      %v468 = vpack.c.b16 %v449, %v448
      %v469 = vpack.c.b16 %v451, %v450
      %v470 = vpack.c.b16 %v453, %v452
      %v471 = vpack.c.b16 %v455, %v454
      %488 = vmatprep.subr.bf16.mxu0 0
      %489 = vmatpush1.bf16.msra.mxu0 %v463
      %490 = vmatprep.subr.bf16.mxu0 0
      %491 = vmatpush1.bf16.msra.mxu0 %v462
      %492 = vmatprep.subr.bf16.mxu0 0
      %493 = vmatpush1.bf16.msra.mxu0 %v461
      %494 = vmatprep.subr.bf16.mxu0 0
      %495 = vmatpush1.bf16.msra.mxu0 %v460
      %496 = vmatprep.subr.bf16.mxu0 0
      %497 = vmatpush1.bf16.msra.mxu0 %v459
      %498 = vmatprep.subr.bf16.mxu0 0
      %499 = vmatpush1.bf16.msra.mxu0 %v458
      %500 = vmatprep.subr.bf16.mxu0 0
      %501 = vmatpush1.bf16.msra.mxu0 %v457
      %502 = vmatprep.subr.bf16.mxu0 0
      %503 = vmatpush1.bf16.msra.mxu0 %v456
      %504 = vmatprep.subr.bf16.mxu0 0
      %505 = vmatpush2.bf16.msra.mxu0 %v471
      %506 = vmatprep.subr.bf16.mxu0 0
      %507 = vmatpush2.bf16.msra.mxu0 %v470
      %508 = vmatprep.subr.bf16.mxu0 0
      %509 = vmatpush2.bf16.msra.mxu0 %v469
      %510 = vmatprep.subr.bf16.mxu0 0
      %511 = vmatpush2.bf16.msra.mxu0 %v468
      %512 = vmatprep.subr.bf16.mxu0 0
      %513 = vmatpush2.bf16.msra.mxu0 %v467
      %514 = vmatprep.subr.bf16.mxu0 0
      %515 = vmatpush2.bf16.msra.mxu0 %v466
      %516 = vmatprep.subr.bf16.mxu0 0
      %517 = vmatpush2.bf16.msra.mxu0 %v465
      %518 = vmatprep.subr.bf16.mxu0 0
      %519 = vmatpush2.bf16.msra.mxu0 %v464
      %520 = vmatprep.mubr.bf16.mxu0 %v352
      %521 = vmatmul.mubr.bf16.gmra.mxu0 %v351
      %v522 = vpop.f32.mrf.mxu0
      %v523 = vadd.f32 %v390, %v522
      %v524 = vpop.f32.mrf.mxu0
      %v525 = vpop.f32.mrf.mxu0
      %v526 = vadd.f32 %v390, %v525
      %v527 = vpop.f32.mrf.mxu0
      %528 = vdwg.mxu0
      %v529 = vmul.f32 %v523, %v523
      %v530 = vmul.f32 %v526, %v526
      %531 = vadd.xlane.f32.xlu0 %v529
      %v532 = vpop.xlane.xlu0 %531
      %533 = vadd.xlane.f32.xlu0 %v530
      %v534 = vpop.xlane.xlu0 %533
      %v535 = vmax.f32 %v532, 1e-24
      %v536 = vmax.f32 %v534, 1e-24
      %v537 = vrsqrt.pop %v535
      %v538 = vrsqrt.pop %v536
      %v539 = vmul.f32 %v523, %v537
      %v540 = vmul.f32 %v526, %v538
      %541 = vst [vmem:[#allocation9] sm:$0xff] %v539
      %542 = vst [vmem:[#allocation9 + $0x8] sm:$0xff] %v540
    $region41: #{tpu_custom_call.1} parent=1 // pred_fallthru
      _
    // Predicated region
    $region42: #{tpu_custom_call.1} parent=1 // pred_check
      _
    $region43: #{tpu_custom_call.1} parent=1 // pred_check_branch
      %544 = sbr.rel (0) target = $region45
    $region44: #{tpu_custom_call.1} parent=1 // pred_region
      %s546 = ssub.s32 256, 256
      %547 = vsyncadd [#allocation5], %s546
      %s548 = sshll.u32 [#allocation9], 4
      %s549 = int_to_ptr.vmem [resolvable:$true] %s548
      %554 = dma.vmem_to_hbm [thread:$0]  %s549, 256, %s5, [#allocation5], 128, 128, 8
    $region45: #{tpu_custom_call.1} parent=1 // pred_fallthru
      _
    // Predicated region
    $region46: #{tpu_custom_call.1} parent=1 // pred_check
      _
    $region47: #{tpu_custom_call.1} parent=1 // pred_check_branch
      %556 = sbr.rel (0) target = $region49
    $region48: #{tpu_custom_call.1} parent=1 // pred_region
      %557 = dma.done [#allocation5], 256
    $region49: #{tpu_custom_call.1} parent=1 // pred_fallthru
      _
    %558 = vsyncpa [#allocation4], 1
    %559 = vsyncpa [#allocation7], 1
    %560 = vsyncpa [#allocation5], 1

</llo_original>
